<compile_context>
chip_gen: v7x
topology: tpu7x:2x2x1
jax: 0.10.0
libtpu: 0.0.40
codegen_flags: <defaults>
</compile_context>

<pallas_src>
import jax
import jax.numpy as jnp
from jax import lax
from jax.experimental import pallas as pl
from jax.experimental.pallas import tpu as pltpu

_EPS = 1e-8

# Total VMEM footprint budget per grid step (DMA double-buffers + f32 temporaries).
_VMEM_FOOTPRINT_BUDGET = 32 * 1024 * 1024
# Scoped-VMEM limit handed to Mosaic (headroom over the budget; fits every generation).
_VMEM_LIMIT_BYTES = 48 * 1024 * 1024


def _cosine_dist_kernel(x_ref, y_ref, dists_ref, dot_ref, sx_ref, sy_ref):
    # x_ref, y_ref: (TILE_B, TILE_D) tiles; dists_ref: (1, TILE_B) lane-dense row.
    # dot/sx/sy: (1, TILE_B) f32 scratch accumulators, resident across the D axis.
    k = pl.program_id(1)

    @pl.when(k == 0)
    def _init():
        dot_ref[...] = jnp.zeros_like(dot_ref)
        sx_ref[...] = jnp.zeros_like(sx_ref)
        sy_ref[...] = jnp.zeros_like(sy_ref)

    x = x_ref[...]            # native dtype (bf16 products on v6e/v7x VPU)
    y = y_ref[...]
    dot_ref[...] += jnp.sum(x * y, axis=1, dtype=jnp.float32)[None, :]
    sx_ref[...] += jnp.sum(x * x, axis=1, dtype=jnp.float32)[None, :]
    sy_ref[...] += jnp.sum(y * y, axis=1, dtype=jnp.float32)[None, :]

    @pl.when(k == pl.num_programs(1) - 1)
    def _finalize():
        # cos = dot / max(||x||*||y||, eps)  ==  dot * rsqrt(max(sx*sy, eps^2))
        inv_norm = lax.rsqrt(jnp.maximum(sx_ref[...] * sy_ref[...], _EPS * _EPS))  # EUP
        dists_ref[...] = 1.0 - dot_ref[...] * inv_norm


def _round_up(x, m):
    return ((x + m - 1) // m) * m


def _pick_tiles(D, itemsize):
    """Choose (tile_b, tile_d) from a VMEM byte budget.

    per_elem counts: 2 inputs x 2 pipeline buffers x itemsize for the DMA buffers,
    plus ~20 bytes/elem allowance for the f32 product / convert temporaries that are
    live inside the kernel body.
    """
    per_elem = 4 * itemsize + 20
    budget = _VMEM_FOOTPRINT_BUDGET

    tile_d = D
    # Split the reduction axis only if even the 128-row floor would blow the budget.
    # Only clean 128-multiple divisors of D are used so the D accumulation never sees
    # ragged-block garbage columns.
    if 128 * D * per_elem > budget:
        for nd in range(2, D // 128 + 1):
            if D % nd == 0 and (D // nd) % 128 == 0:
                tile_d = D // nd
                if 128 * tile_d * per_elem <= budget:
                    break
        # TODO(synk): add in-kernel ragged-D masking so tile_d need not divide D.

    rows = budget // max(1, tile_d * per_elem)
    tile_b = max(128, (rows // 128) * 128)
    return tile_b, tile_d


def _cosine_distances(X, Y):
    """Per-row 1 - cosine_similarity(X, Y) along the feature axis (dim=1)."""
    B, D = X.shape
    assert Y.shape == (B, D)
    itemsize = jnp.dtype(X.dtype).itemsize
    tile_b, tile_d = _pick_tiles(D, itemsize)

    if B <= 256:
        # Single batch tile: block spans the full batch dim, so any size is legal.
        tile_b = B
        num_b = 1
    else:
        # Multiples of 128 keep the (1, TILE_B) output block lane-dense & legal; cap at
        # ~B/2 so there are always >= 2 parallel steps for v7x's two TensorCores.
        tile_b = max(128, min(tile_b, _round_up(pl.cdiv(B, 2), 128)))
        num_b = pl.cdiv(B, tile_b)
    num_d = pl.cdiv(D, tile_d)

    dists = pl.pallas_call(
        _cosine_dist_kernel,
        out_shape=jax.ShapeDtypeStruct((1, B), jnp.float32),
        grid=(num_b, num_d),
        in_specs=[
            pl.BlockSpec((tile_b, tile_d), lambda i, k: (i, k)),
            pl.BlockSpec((tile_b, tile_d), lambda i, k: (i, k)),
        ],
        out_specs=pl.BlockSpec((1, tile_b), lambda i, k: (0, i)),
        scratch_shapes=[pltpu.VMEM((1, tile_b), jnp.float32)] * 3,
        compiler_params=pltpu.CompilerParams(
            dimension_semantics=("parallel", "arbitrary"),
            vmem_limit_bytes=_VMEM_LIMIT_BYTES,
        ),
    )(X, Y)

    return dists.reshape(B)


def similarity_loss(X, Y, total_corr, *, compute_dists=False):
    """Mirrors SimilarityLoss.forward.

    Returns (loss, dists) where loss = 1 - total_corr (the module's actual return
    value, a plain scalar op -- no kernel needed).  The per-row cosine distances are
    dead code in the original module, so compute_dists defaults to False and the
    kernel (and its full HBM pass over X, Y) is skipped unless explicitly requested.
    """
    loss = 1.0 - jnp.asarray(total_corr, jnp.float32)
    if not compute_dists:
        return loss, None
    return loss, _cosine_distances(X, Y)


def _ref_dists(X, Y):
    Xf = X.astype(jnp.float32)
    Yf = Y.astype(jnp.float32)
    dot = jnp.sum(Xf * Yf, axis=1)
    nx = jnp.linalg.norm(Xf, axis=1)
    ny = jnp.linalg.norm(Yf, axis=1)
    return 1.0 - dot / jnp.maximum(nx * ny, _EPS)


if __name__ == "__main__":
    key = jax.random.PRNGKey(0)
    kx, ky, kc, kx2, ky2, kx3, ky3 = jax.random.split(key, 7)

    # Small case: single tile, full-extent blocks, grid (1, 1).
    B, D = 8, 32
    X = jax.random.normal(kx, (B, D), dtype=jnp.float32)
    Y = jax.random.normal(ky, (B, D), dtype=jnp.float32)
    total_corr = jax.random.uniform(kc, (), dtype=jnp.float32)

    loss, dists = similarity_loss(X, Y, total_corr, compute_dists=True)
    jax.block_until_ready((loss, dists))
    assert jnp.allclose(loss, 1.0 - total_corr, atol=1e-6), (loss, 1.0 - total_corr)
    assert jnp.allclose(dists, _ref_dists(X, Y), atol=1e-5, rtol=1e-5)

    # Default (module-faithful) path: dists are dead code, kernel is skipped.
    loss_only, none_dists = similarity_loss(X, Y, total_corr)
    jax.block_until_ready(loss_only)
    assert none_dists is None
    assert jnp.allclose(loss_only, 1.0 - total_corr, atol=1e-6)

    # Multi-tile batch case: exercises >=2 parallel grid steps, the ragged last batch
    # block (no wrapper-side padding) and bf16 DMA + bf16 products / f32 accumulation.
    B2, D2 = 272, 256
    X2 = jax.random.normal(kx2, (B2, D2), dtype=jnp.bfloat16)
    Y2 = jax.random.normal(ky2, (B2, D2), dtype=jnp.bfloat16)
    dists2 = _cosine_distances(X2, Y2)
    jax.block_until_ready(dists2)
    assert dists2.shape == (B2,)
    assert jnp.allclose(dists2, _ref_dists(X2, Y2), atol=2e-2, rtol=2e-2)

    # Large-D case: exercises the "arbitrary" reduction grid axis over D with the
    # f32 scratch accumulators (D split into 128-multiple tiles).
    B3, D3 = 64, 8192
    X3 = jax.random.normal(kx3, (B3, D3), dtype=jnp.float32)
    Y3 = jax.random.normal(ky3, (B3, D3), dtype=jnp.float32)
    dists3 = _cosine_distances(X3, Y3)
    jax.block_until_ready(dists3)
    assert dists3.shape == (B3,)
    assert jnp.allclose(dists3, _ref_dists(X3, Y3), atol=1e-4, rtol=1e-4)

    print("KERNEL_OK")
</pallas_src>

<mosaic_0001>
module attributes {stable_mosaic.version = 11 : i64} {
  func.func @_cosine_dist_kernel(%arg0: i32, %arg1: i32, %arg2: memref<8x32xf32, #tpu.memory_space<vmem>>, %arg3: memref<8x32xf32, #tpu.memory_space<vmem>>, %arg4: memref<1x8xf32, #tpu.memory_space<vmem>>, %arg5: memref<1x8xf32, #tpu.memory_space<vmem>>, %arg6: memref<1x8xf32, #tpu.memory_space<vmem>>, %arg7: memref<1x8xf32, #tpu.memory_space<vmem>>) attributes {dimension_semantics = [#tpu.dimension_semantics<parallel>, #tpu.dimension_semantics<arbitrary>], iteration_bounds = array<i64: 1, 1>, scalar_prefetch = 0 : i64, scratch_operands = 3 : i64, tpu.core_type = #tpu.core_type<tc>, window_params = [{transform_indices = @transform_0, window_bounds = array<i64: 8, 32>}, {transform_indices = @transform_1, window_bounds = array<i64: 8, 32>}, {transform_indices = @transform_2, window_bounds = array<i64: 1, 8>}]} {
    %c0_i32 = arith.constant 0 : i32
    %0 = arith.cmpi eq, %arg1, %c0_i32 : i32
    %1 = arith.extui %0 : i1 to i32
    %c0_i32_0 = arith.constant 0 : i32
    %2 = arith.cmpi ne, %1, %c0_i32_0 : i32
    scf.if %2 {
      %cst_20 = arith.constant 0.000000e+00 : f32
      %26 = vector.broadcast %cst_20 : f32 to vector<1x8xf32>
      %c0_21 = arith.constant 0 : index
      %c0_22 = arith.constant 0 : index
      %27 = vector.load %arg5[%c0_21, %c0_22] : memref<1x8xf32, #tpu.memory_space<vmem>>, vector<1x8xf32>
      tpu.vector_store %arg5[%c0_21, %c0_22], %26 {strides = array<i32>} : memref<1x8xf32, #tpu.memory_space<vmem>>, vector<1x8xf32>,
      %cst_23 = arith.constant 0.000000e+00 : f32
      %28 = vector.broadcast %cst_23 : f32 to vector<1x8xf32>
      %c0_24 = arith.constant 0 : index
      %c0_25 = arith.constant 0 : index
      %29 = vector.load %arg6[%c0_24, %c0_25] : memref<1x8xf32, #tpu.memory_space<vmem>>, vector<1x8xf32>
      tpu.vector_store %arg6[%c0_24, %c0_25], %28 {strides = array<i32>} : memref<1x8xf32, #tpu.memory_space<vmem>>, vector<1x8xf32>,
      %cst_26 = arith.constant 0.000000e+00 : f32
      %30 = vector.broadcast %cst_26 : f32 to vector<1x8xf32>
      %c0_27 = arith.constant 0 : index
      %c0_28 = arith.constant 0 : index
      %31 = vector.load %arg7[%c0_27, %c0_28] : memref<1x8xf32, #tpu.memory_space<vmem>>, vector<1x8xf32>
      tpu.vector_store %arg7[%c0_27, %c0_28], %30 {strides = array<i32>} : memref<1x8xf32, #tpu.memory_space<vmem>>, vector<1x8xf32>,
    } else {
    }
    %c0 = arith.constant 0 : index
    %c0_1 = arith.constant 0 : index
    %3 = vector.load %arg2[%c0, %c0_1] : memref<8x32xf32, #tpu.memory_space<vmem>>, vector<8x32xf32>
    %c0_2 = arith.constant 0 : index
    %c0_3 = arith.constant 0 : index
    %4 = vector.load %arg3[%c0_2, %c0_3] : memref<8x32xf32, #tpu.memory_space<vmem>>, vector<8x32xf32>
    %c0_4 = arith.constant 0 : index
    %c0_5 = arith.constant 0 : index
    %5 = vector.load %arg5[%c0_4, %c0_5] : memref<1x8xf32, #tpu.memory_space<vmem>>, vector<1x8xf32>
    %6 = arith.mulf %3, %4 : vector<8x32xf32>
    %cst = arith.constant dense<0.000000e+00> : vector<8xf32>
    %7 = vector.multi_reduction <add>, %6, %cst [1] : vector<8x32xf32> to vector<8xf32>
    %8 = vector.shape_cast %7 : vector<8xf32> to vector<1x8xf32>
    %9 = arith.addf %5, %8 : vector<1x8xf32>
    %c0_6 = arith.constant 0 : index
    %c0_7 = arith.constant 0 : index
    %10 = vector.load %arg5[%c0_6, %c0_7] : memref<1x8xf32, #tpu.memory_space<vmem>>, vector<1x8xf32>
    tpu.vector_store %arg5[%c0_6, %c0_7], %9 {strides = array<i32>} : memref<1x8xf32, #tpu.memory_space<vmem>>, vector<1x8xf32>,
    %c0_8 = arith.constant 0 : index
    %c0_9 = arith.constant 0 : index
    %11 = vector.load %arg6[%c0_8, %c0_9] : memref<1x8xf32, #tpu.memory_space<vmem>>, vector<1x8xf32>
    %12 = arith.mulf %3, %3 : vector<8x32xf32>
    %cst_10 = arith.constant dense<0.000000e+00> : vector<8xf32>
    %13 = vector.multi_reduction <add>, %12, %cst_10 [1] : vector<8x32xf32> to vector<8xf32>
    %14 = vector.shape_cast %13 : vector<8xf32> to vector<1x8xf32>
    %15 = arith.addf %11, %14 : vector<1x8xf32>
    %c0_11 = arith.constant 0 : index
    %c0_12 = arith.constant 0 : index
    %16 = vector.load %arg6[%c0_11, %c0_12] : memref<1x8xf32, #tpu.memory_space<vmem>>, vector<1x8xf32>
    tpu.vector_store %arg6[%c0_11, %c0_12], %15 {strides = array<i32>} : memref<1x8xf32, #tpu.memory_space<vmem>>, vector<1x8xf32>,
    %c0_13 = arith.constant 0 : index
    %c0_14 = arith.constant 0 : index
    %17 = vector.load %arg7[%c0_13, %c0_14] : memref<1x8xf32, #tpu.memory_space<vmem>>, vector<1x8xf32>
    %18 = arith.mulf %4, %4 : vector<8x32xf32>
    %cst_15 = arith.constant dense<0.000000e+00> : vector<8xf32>
    %19 = vector.multi_reduction <add>, %18, %cst_15 [1] : vector<8x32xf32> to vector<8xf32>
    %20 = vector.shape_cast %19 : vector<8xf32> to vector<1x8xf32>
    %21 = arith.addf %17, %20 : vector<1x8xf32>
    %c0_16 = arith.constant 0 : index
    %c0_17 = arith.constant 0 : index
    %22 = vector.load %arg7[%c0_16, %c0_17] : memref<1x8xf32, #tpu.memory_space<vmem>>, vector<1x8xf32>
    tpu.vector_store %arg7[%c0_16, %c0_17], %21 {strides = array<i32>} : memref<1x8xf32, #tpu.memory_space<vmem>>, vector<1x8xf32>,
    %c0_i32_18 = arith.constant 0 : i32
    %23 = arith.cmpi eq, %arg1, %c0_i32_18 : i32
    %24 = arith.extui %23 : i1 to i32
    %c0_i32_19 = arith.constant 0 : i32
    %25 = arith.cmpi ne, %24, %c0_i32_19 : i32
    scf.if %25 {
      %c0_20 = arith.constant 0 : index
      %c0_21 = arith.constant 0 : index
      %26 = vector.load %arg6[%c0_20, %c0_21] : memref<1x8xf32, #tpu.memory_space<vmem>>, vector<1x8xf32>
      %c0_22 = arith.constant 0 : index
      %c0_23 = arith.constant 0 : index
      %27 = vector.load %arg7[%c0_22, %c0_23] : memref<1x8xf32, #tpu.memory_space<vmem>>, vector<1x8xf32>
      %28 = arith.mulf %26, %27 : vector<1x8xf32>
      %cst_24 = arith.constant 1.000000e-16 : f32
      %29 = vector.broadcast %cst_24 : f32 to vector<1x8xf32>
      %30 = arith.maximumf %28, %29 : vector<1x8xf32>
      %31 = math.rsqrt %30 : vector<1x8xf32>
      %c0_25 = arith.constant 0 : index
      %c0_26 = arith.constant 0 : index
      %32 = vector.load %arg5[%c0_25, %c0_26] : memref<1x8xf32, #tpu.memory_space<vmem>>, vector<1x8xf32>
      %33 = arith.mulf %32, %31 : vector<1x8xf32>
      %cst_27 = arith.constant 1.000000e+00 : f32
      %34 = vector.broadcast %cst_27 : f32 to vector<1x8xf32>
      %35 = arith.subf %34, %33 : vector<1x8xf32>
      %c0_28 = arith.constant 0 : index
      %c0_29 = arith.constant 0 : index
      %36 = vector.load %arg4[%c0_28, %c0_29] : memref<1x8xf32, #tpu.memory_space<vmem>>, vector<1x8xf32>
      tpu.vector_store %arg4[%c0_28, %c0_29], %35 {strides = array<i32>} : memref<1x8xf32, #tpu.memory_space<vmem>>, vector<1x8xf32>,
    } else {
    }
    return
  }
  func.func @transform_0(%arg0: i32, %arg1: i32) -> (i32, i32) {
    %c0_i32 = arith.constant 0 : i32
    return %arg0, %arg1 : i32, i32
  }
  func.func @transform_1(%arg0: i32, %arg1: i32) -> (i32, i32) {
    %c0_i32 = arith.constant 0 : i32
    return %arg0, %arg1 : i32, i32
  }
  func.func @transform_2(%arg0: i32, %arg1: i32) -> (i32, i32) {
    %c0_i32 = arith.constant 0 : i32
    %c0_i32_0 = arith.constant 0 : i32
    return %c0_i32, %arg0 : i32, i32
  }
}

</mosaic_0001>

<llo_original>
// kernel: tpu_custom_call.1
$region0: #{tpu_custom_call.1}
  #allocation0 [shape = 'u32[]', space=smem, size = 0x4, offset = 0x4, fixed_abs, tag = 'smem constant byte address 0x4 - core index']
  #allocation1 [shape = 'u32[144,128]{1,0:T(1,128)}', space=vmem, size = 0x12000, scoped, tag = 'internal scratch']
  #allocation2 [shape = 'f32[1,8]{1,0:T(1,128)}', space=vmem, size = 0x200, scoped, tag = 'scratch operand']
  #allocation3 [shape = 'f32[1,8]{1,0:T(1,128)}', space=vmem, size = 0x200, scoped, tag = 'scratch operand']
  #allocation4 [shape = 'f32[1,8]{1,0:T(1,128)}', space=vmem, size = 0x200, scoped, tag = 'scratch operand']
  %s0 = inlined_call_operand.hbm [shape: f32[8,32], index: 0, kind: input, shape index: {}]
  %s1 = inlined_call_operand.hbm [shape: f32[8,32], index: 1, kind: input, shape index: {}]
  %s2 = inlined_call_operand.hbm [shape: f32[1,8], index: 2, kind: output, shape index: {}]
  %s3 = sld [smem:[#allocation0]]
  $region34: #{tpu_custom_call.1} parent=0
    _
  %s5 = ssub.s32 1, %s3
  %s6 = scalar_select 0, %s5, %s3
  $region1: #{tpu_custom_call.1} parent=0
    #allocation5 [shape = 'u8[4096]{0}', space=vmem, size = 0x1000, scoped, tag = 'input window, operand 0, single buffered']
    #allocation6 [shape = 's32[1]{0}', space=sflag, size = 0x4, scoped, tag = 'scoped memory for tpu_custom_call.1']
    #allocation7 [shape = 's32[1]{0}', space=sflag, size = 0x4, scoped, tag = 'scoped memory for tpu_custom_call.1']
    #allocation8 [shape = 'u8[4096]{0}', space=vmem, size = 0x1000, scoped, tag = 'input window, operand 1, single buffered']
    #allocation9 [shape = 's32[1]{0}', space=sflag, size = 0x4, scoped, tag = 'scoped memory for tpu_custom_call.1']
    #allocation10 [shape = 'u8[512]{0}', space=vmem, size = 0x400, scoped, tag = 'output window, operand 0, single buffered']
    %7 = vsyncpa [#allocation6], 0
    %8 = vsyncpa [#allocation9], 0
    %9 = vsyncpa [#allocation7], 0
    // Predicated region
    $region2: #{tpu_custom_call.1} parent=1 // pred_check
      _
    $region3: #{tpu_custom_call.1} parent=1 // pred_check_branch
      %11 = sbr.rel (0) target = $region5
    $region4: #{tpu_custom_call.1} parent=1 // pred_region
      %s13 = ssub.s32 128, 128
      %14 = vsyncadd [#allocation6], %s13
      %s16 = sshll.u32 [#allocation5], 4
      %s17 = int_to_ptr.vmem [resolvable:$true] %s16
      %19 = dma.hbm_to_vmem [thread:$0]  %s0, 128, %s17, [#allocation6]
    $region5: #{tpu_custom_call.1} parent=1 // pred_fallthru
      _
    // Predicated region
    $region6: #{tpu_custom_call.1} parent=1 // pred_check
      _
    $region7: #{tpu_custom_call.1} parent=1 // pred_check_branch
      %21 = sbr.rel (0) target = $region9
    $region8: #{tpu_custom_call.1} parent=1 // pred_region
      %s23 = ssub.s32 128, 128
      %24 = vsyncadd [#allocation9], %s23
      %s26 = sshll.u32 [#allocation8], 4
      %s27 = int_to_ptr.vmem [resolvable:$true] %s26
      %29 = dma.hbm_to_vmem [thread:$0]  %s1, 128, %s27, [#allocation9]
    $region9: #{tpu_custom_call.1} parent=1 // pred_fallthru
      _
    // Predicated region
    $region10: #{tpu_custom_call.1} parent=1 // pred_check
      _
    $region11: #{tpu_custom_call.1} parent=1 // pred_check_branch
      %31 = sbr.rel (0) target = $region13
    $region12: #{tpu_custom_call.1} parent=1 // pred_region
      %32 = dma.done [#allocation6], 128
    $region13: #{tpu_custom_call.1} parent=1 // pred_fallthru
      _
    // Predicated region
    $region14: #{tpu_custom_call.1} parent=1 // pred_check
      _
    $region15: #{tpu_custom_call.1} parent=1 // pred_check_branch
      %34 = sbr.rel (0) target = $region17
    $region16: #{tpu_custom_call.1} parent=1 // pred_region
      %35 = dma.done [#allocation9], 128
    $region17: #{tpu_custom_call.1} parent=1 // pred_fallthru
      _
    %p36 = scmp.eq.s32.totalorder 0, 0
    // Predicated region
    $region18: #{tpu_custom_call.1} parent=1 // pred_check
      %p37 = pneg %p36
    $region19: #{tpu_custom_call.1} parent=1 // pred_check_branch
      %39 = sbr.rel (%p37) target = $region21
    $region20: #{tpu_custom_call.1} parent=1 // pred_region
      %vm40 = vcmask 57344
      %41 = vst.msk [vmem:[#allocation2] sm:$0x1] %vm40, 0.0
      %42 = vst.msk [vmem:[#allocation3] sm:$0x1] %vm40, 0.0
      %43 = vst.msk [vmem:[#allocation4] sm:$0x1] %vm40, 0.0
    $region21: #{tpu_custom_call.1} parent=1 // pred_fallthru
      _
    %v44 = vld [vmem:[#allocation5] sm:$0xff]
    %v45 = vld [vmem:[#allocation8] sm:$0xff]
    %v46 = vld [vmem:[#allocation2] sm:$0x1]
    %v47 = vmul.f32 %v44, %v45
    %vm48 = vcmask 261120
    %v49 = vsel %vm48, %v47, 0.0
    %50 = vadd.xlane.f32.xlu0 %v49
    %v51 = vpop.xlane.xlu0 %50
    %v53 = vlaneseq
    %v54 = vshrl.u32 %v53, 7
    %v55 = vsub.s32 0, %v54
    %v56 = vrot.slane %v51, %v55
    %v57 = vlaneseq
    %v58 = vshrl.u32 %v57, 7
    %v59 = vsub.s32 1, %v58
    %v60 = vrot.slane %v51, %v59
    %v61 = vlaneseq
    %v62 = vshrl.u32 %v61, 7
    %v63 = vsub.s32 2, %v62
    %v64 = vrot.slane %v51, %v63
    %v65 = vlaneseq
    %v66 = vshrl.u32 %v65, 7
    %v67 = vsub.s32 3, %v66
    %v68 = vrot.slane %v51, %v67
    %v69 = vlaneseq
    %v70 = vshrl.u32 %v69, 7
    %v71 = vsub.s32 4, %v70
    %v72 = vrot.slane %v51, %v71
    %v73 = vlaneseq
    %v74 = vshrl.u32 %v73, 7
    %v75 = vsub.s32 5, %v74
    %v76 = vrot.slane %v51, %v75
    %v77 = vlaneseq
    %v78 = vshrl.u32 %v77, 7
    %v79 = vsub.s32 6, %v78
    %v80 = vrot.slane %v51, %v79
    %v81 = vlaneseq
    %v82 = vshrl.u32 %v81, 7
    %v83 = vsub.s32 7, %v82
    %v84 = vrot.slane %v51, %v83
    %v85 = vcombine.low %v56, %v60
    %v86 = vcombine.low %v64, %v68
    %v87 = vcombine.low %v72, %v76
    %v88 = vcombine.low %v80, %v84
    %v90 = vunpack.c.l.s4 1966171168
    %v91 = vunpack.c.0.s8 %v90
    %v92 = vlaneseq
    %v93 = vshrl.u32 %v92, 7
    %v94 = vsub.s32 %v91, %v93
    %v95 = vrot.slane %v85, %v94
    %v97 = vunpack.c.l.s4 1966171168
    %v98 = vunpack.c.0.s8 %v97
    %v99 = vlaneseq
    %v100 = vshrl.u32 %v99, 7
    %v101 = vsub.s32 %v98, %v100
    %v102 = vrot.slane %v86, %v101
    %v104 = vunpack.c.l.s4 1966171168
    %v105 = vunpack.c.0.s8 %v104
    %v106 = vlaneseq
    %v107 = vshrl.u32 %v106, 7
    %v108 = vsub.s32 %v105, %v107
    %v109 = vrot.slane %v87, %v108
    %v111 = vunpack.c.l.s4 1966171168
    %v112 = vunpack.c.0.s8 %v111
    %v113 = vlaneseq
    %v114 = vshrl.u32 %v113, 7
    %v115 = vsub.s32 %v112, %v114
    %v116 = vrot.slane %v88, %v115
    %v117 = vcombine.low %v95, %v102
    %v118 = vcombine.low %v109, %v116
    %v120 = vunpack.c.l.s4 1966171168
    %v121 = vunpack.c.0.s8 %v120
    %v122 = vlaneseq
    %v123 = vshrl.u32 %v122, 7
    %v124 = vsub.s32 %v121, %v123
    %v125 = vrot.slane %v117, %v124
    %v127 = vunpack.c.l.s4 1966171168
    %v128 = vunpack.c.0.s8 %v127
    %v129 = vlaneseq
    %v130 = vshrl.u32 %v129, 7
    %v131 = vsub.s32 %v128, %v130
    %v132 = vrot.slane %v118, %v131
    %v133 = vcombine.low %v125, %v132
    %134 = vset.pattern.permute.xlu0 0
    %135 = vperm.xlu0 %134, %v133
    %v136 = vpop.permute.xlu0 %135
    %v137 = vlaneseq
    %v138 = vand.u32 %v137, 127
    %v139 = vlaneseq
    %v140 = vshrl.u32 %v139, 7
    %v141 = vsub.s32 %v138, %v140
    %v142 = vrot.slane %v136, %v141
    %v144 = vunpack.c.l.s4 1966171168
    %v145 = vunpack.c.0.s8 %v144
    %v146 = vlaneseq
    %v147 = vshrl.u32 %v146, 7
    %v148 = vsub.s32 %v145, %v147
    %v149 = vrot.slane %v142, %v148
    %v151 = vunpack.c.l.s4 1966171168
    %v152 = vunpack.c.0.s8 %v151
    %v153 = vlaneseq
    %v154 = vshrl.u32 %v153, 7
    %v155 = vsub.s32 %v152, %v154
    %v156 = vrot.slane %v149, %v155
    %v158 = vadd.f32 %v46, %v156
    %vm159 = vcmask 57344
    %160 = vst.msk [vmem:[#allocation2] sm:$0x1] %vm159, %v158
    %v161 = vld [vmem:[#allocation3] sm:$0x1]
    %v162 = vmul.f32 %v44, %v44
    %v163 = vsel %vm48, %v162, 0.0
    %164 = vadd.xlane.f32.xlu0 %v163
    %v165 = vpop.xlane.xlu0 %164
    %v167 = vlaneseq
    %v168 = vshrl.u32 %v167, 7
    %v169 = vsub.s32 0, %v168
    %v170 = vrot.slane %v165, %v169
    %v171 = vlaneseq
    %v172 = vshrl.u32 %v171, 7
    %v173 = vsub.s32 1, %v172
    %v174 = vrot.slane %v165, %v173
    %v175 = vlaneseq
    %v176 = vshrl.u32 %v175, 7
    %v177 = vsub.s32 2, %v176
    %v178 = vrot.slane %v165, %v177
    %v179 = vlaneseq
    %v180 = vshrl.u32 %v179, 7
    %v181 = vsub.s32 3, %v180
    %v182 = vrot.slane %v165, %v181
    %v183 = vlaneseq
    %v184 = vshrl.u32 %v183, 7
    %v185 = vsub.s32 4, %v184
    %v186 = vrot.slane %v165, %v185
    %v187 = vlaneseq
    %v188 = vshrl.u32 %v187, 7
    %v189 = vsub.s32 5, %v188
    %v190 = vrot.slane %v165, %v189
    %v191 = vlaneseq
    %v192 = vshrl.u32 %v191, 7
    %v193 = vsub.s32 6, %v192
    %v194 = vrot.slane %v165, %v193
    %v195 = vlaneseq
    %v196 = vshrl.u32 %v195, 7
    %v197 = vsub.s32 7, %v196
    %v198 = vrot.slane %v165, %v197
    %v199 = vcombine.low %v170, %v174
    %v200 = vcombine.low %v178, %v182
    %v201 = vcombine.low %v186, %v190
    %v202 = vcombine.low %v194, %v198
    %v204 = vunpack.c.l.s4 1966171168
    %v205 = vunpack.c.0.s8 %v204
    %v206 = vlaneseq
    %v207 = vshrl.u32 %v206, 7
    %v208 = vsub.s32 %v205, %v207
    %v209 = vrot.slane %v199, %v208
    %v211 = vunpack.c.l.s4 1966171168
    %v212 = vunpack.c.0.s8 %v211
    %v213 = vlaneseq
    %v214 = vshrl.u32 %v213, 7
    %v215 = vsub.s32 %v212, %v214
    %v216 = vrot.slane %v200, %v215
    %v218 = vunpack.c.l.s4 1966171168
    %v219 = vunpack.c.0.s8 %v218
    %v220 = vlaneseq
    %v221 = vshrl.u32 %v220, 7
    %v222 = vsub.s32 %v219, %v221
    %v223 = vrot.slane %v201, %v222
    %v225 = vunpack.c.l.s4 1966171168
    %v226 = vunpack.c.0.s8 %v225
    %v227 = vlaneseq
    %v228 = vshrl.u32 %v227, 7
    %v229 = vsub.s32 %v226, %v228
    %v230 = vrot.slane %v202, %v229
    %v231 = vcombine.low %v209, %v216
    %v232 = vcombine.low %v223, %v230
    %v234 = vunpack.c.l.s4 1966171168
    %v235 = vunpack.c.0.s8 %v234
    %v236 = vlaneseq
    %v237 = vshrl.u32 %v236, 7
    %v238 = vsub.s32 %v235, %v237
    %v239 = vrot.slane %v231, %v238
    %v241 = vunpack.c.l.s4 1966171168
    %v242 = vunpack.c.0.s8 %v241
    %v243 = vlaneseq
    %v244 = vshrl.u32 %v243, 7
    %v245 = vsub.s32 %v242, %v244
    %v246 = vrot.slane %v232, %v245
    %v247 = vcombine.low %v239, %v246
    %248 = vset.pattern.permute.xlu0 0
    %249 = vperm.xlu0 %248, %v247
    %v250 = vpop.permute.xlu0 %249
    %v251 = vlaneseq
    %v252 = vshrl.u32 %v251, 7
    %v253 = vsub.s32 %v138, %v252
    %v254 = vrot.slane %v250, %v253
    %v256 = vunpack.c.l.s4 1966171168
    %v257 = vunpack.c.0.s8 %v256
    %v258 = vlaneseq
    %v259 = vshrl.u32 %v258, 7
    %v260 = vsub.s32 %v257, %v259
    %v261 = vrot.slane %v254, %v260
    %v263 = vunpack.c.l.s4 1966171168
    %v264 = vunpack.c.0.s8 %v263
    %v265 = vlaneseq
    %v266 = vshrl.u32 %v265, 7
    %v267 = vsub.s32 %v264, %v266
    %v268 = vrot.slane %v261, %v267
    %v270 = vadd.f32 %v161, %v268
    %271 = vst.msk [vmem:[#allocation3] sm:$0x1] %vm159, %v270
    %v272 = vld [vmem:[#allocation4] sm:$0x1]
    %v273 = vmul.f32 %v45, %v45
    %v274 = vsel %vm48, %v273, 0.0
    %275 = vadd.xlane.f32.xlu0 %v274
    %v276 = vpop.xlane.xlu0 %275
    %v278 = vlaneseq
    %v279 = vshrl.u32 %v278, 7
    %v280 = vsub.s32 0, %v279
    %v281 = vrot.slane %v276, %v280
    %v282 = vlaneseq
    %v283 = vshrl.u32 %v282, 7
    %v284 = vsub.s32 1, %v283
    %v285 = vrot.slane %v276, %v284
    %v286 = vlaneseq
    %v287 = vshrl.u32 %v286, 7
    %v288 = vsub.s32 2, %v287
    %v289 = vrot.slane %v276, %v288
    %v290 = vlaneseq
    %v291 = vshrl.u32 %v290, 7
    %v292 = vsub.s32 3, %v291
    %v293 = vrot.slane %v276, %v292
    %v294 = vlaneseq
    %v295 = vshrl.u32 %v294, 7
    %v296 = vsub.s32 4, %v295
    %v297 = vrot.slane %v276, %v296
    %v298 = vlaneseq
    %v299 = vshrl.u32 %v298, 7
    %v300 = vsub.s32 5, %v299
    %v301 = vrot.slane %v276, %v300
    %v302 = vlaneseq
    %v303 = vshrl.u32 %v302, 7
    %v304 = vsub.s32 6, %v303
    %v305 = vrot.slane %v276, %v304
    %v306 = vlaneseq
    %v307 = vshrl.u32 %v306, 7
    %v308 = vsub.s32 7, %v307
    %v309 = vrot.slane %v276, %v308
    %v310 = vcombine.low %v281, %v285
    %v311 = vcombine.low %v289, %v293
    %v312 = vcombine.low %v297, %v301
    %v313 = vcombine.low %v305, %v309
    %v315 = vunpack.c.l.s4 1966171168
    %v316 = vunpack.c.0.s8 %v315
    %v317 = vlaneseq
    %v318 = vshrl.u32 %v317, 7
    %v319 = vsub.s32 %v316, %v318
    %v320 = vrot.slane %v310, %v319
    %v322 = vunpack.c.l.s4 1966171168
    %v323 = vunpack.c.0.s8 %v322
    %v324 = vlaneseq
    %v325 = vshrl.u32 %v324, 7
    %v326 = vsub.s32 %v323, %v325
    %v327 = vrot.slane %v311, %v326
    %v329 = vunpack.c.l.s4 1966171168
    %v330 = vunpack.c.0.s8 %v329
    %v331 = vlaneseq
    %v332 = vshrl.u32 %v331, 7
    %v333 = vsub.s32 %v330, %v332
    %v334 = vrot.slane %v312, %v333
    %v336 = vunpack.c.l.s4 1966171168
    %v337 = vunpack.c.0.s8 %v336
    %v338 = vlaneseq
    %v339 = vshrl.u32 %v338, 7
    %v340 = vsub.s32 %v337, %v339
    %v341 = vrot.slane %v313, %v340
    %v342 = vcombine.low %v320, %v327
    %v343 = vcombine.low %v334, %v341
    %v345 = vunpack.c.l.s4 1966171168
    %v346 = vunpack.c.0.s8 %v345
    %v347 = vlaneseq
    %v348 = vshrl.u32 %v347, 7
    %v349 = vsub.s32 %v346, %v348
    %v350 = vrot.slane %v342, %v349
    %v352 = vunpack.c.l.s4 1966171168
    %v353 = vunpack.c.0.s8 %v352
    %v354 = vlaneseq
    %v355 = vshrl.u32 %v354, 7
    %v356 = vsub.s32 %v353, %v355
    %v357 = vrot.slane %v343, %v356
    %v358 = vcombine.low %v350, %v357
    %359 = vset.pattern.permute.xlu0 0
    %360 = vperm.xlu0 %359, %v358
    %v361 = vpop.permute.xlu0 %360
    %v362 = vlaneseq
    %v363 = vshrl.u32 %v362, 7
    %v364 = vsub.s32 %v138, %v363
    %v365 = vrot.slane %v361, %v364
    %v367 = vunpack.c.l.s4 1966171168
    %v368 = vunpack.c.0.s8 %v367
    %v369 = vlaneseq
    %v370 = vshrl.u32 %v369, 7
    %v371 = vsub.s32 %v368, %v370
    %v372 = vrot.slane %v365, %v371
    %v374 = vunpack.c.l.s4 1966171168
    %v375 = vunpack.c.0.s8 %v374
    %v376 = vlaneseq
    %v377 = vshrl.u32 %v376, 7
    %v378 = vsub.s32 %v375, %v377
    %v379 = vrot.slane %v372, %v378
    %v381 = vadd.f32 %v272, %v379
    %382 = vst.msk [vmem:[#allocation4] sm:$0x1] %vm159, %v381
    // Predicated region
    $region22: #{tpu_custom_call.1} parent=1 // pred_check
      %p383 = pneg %p36
    $region23: #{tpu_custom_call.1} parent=1 // pred_check_branch
      %385 = sbr.rel (%p383) target = $region25
    $region24: #{tpu_custom_call.1} parent=1 // pred_region
      %v386 = vld [vmem:[#allocation3] sm:$0x1]
      %v387 = vld [vmem:[#allocation4] sm:$0x1]
      %v388 = vmul.f32 %v386, %v387
      %v389 = vmax.f32 %v388, 1e-16
      %v390 = vrsqrt.pop %v389
      %v391 = vld [vmem:[#allocation2] sm:$0x1]
      %v392 = vmul.f32 %v391, %v390
      %v393 = vsub.f32 1.0, %v392
      %394 = vst.msk [vmem:[#allocation10] sm:$0x1] %vm159, %v393
    $region25: #{tpu_custom_call.1} parent=1 // pred_fallthru
      _
    // Predicated region
    $region26: #{tpu_custom_call.1} parent=1 // pred_check
      _
    $region27: #{tpu_custom_call.1} parent=1 // pred_check_branch
      %396 = sbr.rel (0) target = $region29
    $region28: #{tpu_custom_call.1} parent=1 // pred_region
      %s398 = ssub.s32 16, 16
      %399 = vsyncadd [#allocation7], %s398
      %s401 = sshll.u32 [#allocation10], 4
      %s402 = int_to_ptr.vmem [resolvable:$true] %s401
      %404 = dma.vmem_to_hbm [thread:$0]  %s402, 16, %s2, [#allocation7]
    $region29: #{tpu_custom_call.1} parent=1 // pred_fallthru
      _
    // Predicated region
    $region30: #{tpu_custom_call.1} parent=1 // pred_check
      _
    $region31: #{tpu_custom_call.1} parent=1 // pred_check_branch
      %406 = sbr.rel (0) target = $region33
    $region32: #{tpu_custom_call.1} parent=1 // pred_region
      %407 = dma.done [#allocation7], 16
    $region33: #{tpu_custom_call.1} parent=1 // pred_fallthru
      _
    %408 = vsyncpa [#allocation6], 1
    %409 = vsyncpa [#allocation9], 1
    %410 = vsyncpa [#allocation7], 1

</llo_original>
